<compile_context>
chip_gen: v7x
topology: tpu7x:2x2x1
jax: 0.10.0
libtpu: 0.0.40
codegen_flags: <defaults>
</compile_context>

<pallas_src>
import functools

import jax
import jax.numpy as jnp
from jax.experimental import pallas as pl
from jax.experimental.pallas import tpu as pltpu


_VMEM_LIMIT = 48 * 1024 * 1024          # safe on v5e/v6e (128 MiB phys) and v7x (64 MiB phys)
_TARGET_BLOCK_BYTES = 4 * 1024 * 1024   # per-step x tile; 2x in + 2x out double buffers << VMEM


def _mean_kernel(x_ref, mean_ref, acc_ref, *, inv_hw):
    """Streaming spatial mean.  grid = (B, n_hw_tiles); HW reduction axis last."""
    j = pl.program_id(1)

    @pl.when(j == 0)
    def _():
        acc_ref[...] = jnp.zeros_like(acc_ref)

    x = x_ref[...].astype(jnp.float32)                # (1, C, hw_tile)
    acc_ref[...] += jnp.sum(x, axis=2)[:, None, :]    # (1, 1, C) f32 accumulate

    @pl.when(j == pl.num_programs(1) - 1)
    def _():
        # divide by the TRUE H*W (zero padding does not perturb the sum)
        mean_ref[...] = (acc_ref[...] * inv_hw).astype(mean_ref.dtype)


def _scale_kernel(s_ref, x_ref, o_ref):
    """Streaming channel rescale: out = x * s.  s resident, x/o streamed."""
    o_ref[...] = x_ref[...] * s_ref[...]


def _choose_hw_tile(C, HW):
    # largest lane-dense (multiple-of-128) tile under the per-block byte target
    max_lanes = max(128, (_TARGET_BLOCK_BYTES // (C * 4)) // 128 * 128)
    return int(min(int(pl.cdiv(HW, 128)) * 128, max_lanes))


@jax.jit
def task_normalization(x, w1, b1, w2, b2):
    """x: (B, C, H, W). w1: (C, C//r), b1: (1, C//r), w2: (C//r, C), b2: (1, C)."""
    B, C, H, W = x.shape
    HW = H * W
    hw_tile = _choose_hw_tile(C, HW)
    n_hw = int(pl.cdiv(HW, hw_tile))
    hw_pad = n_hw * hw_tile

    x_flat = x.reshape(B, C, HW)
    if hw_pad != HW:
        # keep the output lane-dense: pad the spatial axis up to a multiple of hw_tile
        x_flat = jnp.pad(x_flat, ((0, 0), (0, 0), (0, hw_pad - HW)))

    # ---- pass 1: streaming reduction  sum_hw(x) / HW -> mean (B, 1, C) --------------
    mean = pl.pallas_call(
        functools.partial(_mean_kernel, inv_hw=1.0 / float(HW)),
        out_shape=jax.ShapeDtypeStruct((B, 1, C), jnp.float32),
        grid=(B, n_hw),
        in_specs=[pl.BlockSpec((1, C, hw_tile), lambda b, j: (b, 0, j))],
        out_specs=pl.BlockSpec((1, 1, C), lambda b, j: (b, 0, 0)),
        scratch_shapes=[pltpu.VMEM((1, 1, C), jnp.float32)],
        compiler_params=pltpu.CompilerParams(
            dimension_semantics=("parallel", "arbitrary"),
            vmem_limit_bytes=_VMEM_LIMIT,
        ),
    )(x_flat)
    mean = mean.reshape(B, C)

    # ---- tiny FC stack: negligible FLOPs, done in plain JAX off the HBM-bound path --
    h = jnp.maximum(jnp.dot(mean, w1, preferred_element_type=jnp.float32) + b1, 0.0)
    s = jax.nn.sigmoid(jnp.dot(h, w2, preferred_element_type=jnp.float32) + b2)
    s = s.reshape(B, C, 1).astype(x.dtype)

    # ---- pass 2: streaming elementwise rescale  out = x * s -------------------------
    out_flat = pl.pallas_call(
        _scale_kernel,
        out_shape=jax.ShapeDtypeStruct((B, C, hw_pad), x.dtype),
        grid=(B, n_hw),
        in_specs=[
            pl.BlockSpec((1, C, 1), lambda b, j: (b, 0, 0)),        # s: resident (constant index_map)
            pl.BlockSpec((1, C, hw_tile), lambda b, j: (b, 0, j)),  # x: streamed
        ],
        out_specs=pl.BlockSpec((1, C, hw_tile), lambda b, j: (b, 0, j)),
        compiler_params=pltpu.CompilerParams(
            dimension_semantics=("parallel", "parallel"),
            vmem_limit_bytes=_VMEM_LIMIT,
        ),
        input_output_aliases={1: 0},   # write in place over the (padded) x slab
    )(s, x_flat)

    if hw_pad != HW:
        out_flat = out_flat[:, :, :HW]
    return out_flat.reshape(B, C, H, W)


def _xavier_uniform(key, fan_in, fan_out):
    # torch.nn.init.xavier_uniform_ on a (fan_out, fan_in) Linear weight,
    # returned transposed (fan_in, fan_out) so the wrapper does m @ W.
    bound = (6.0 / (fan_in + fan_out)) ** 0.5
    return jax.random.uniform(key, (fan_in, fan_out), jnp.float32, -bound, bound)


def _bias_init(key, fan_in, fan_out):
    # PyTorch default Linear bias init: U(-1/sqrt(fan_in), 1/sqrt(fan_in)).
    bound = 1.0 / (fan_in ** 0.5)
    return jax.random.uniform(key, (1, fan_out), jnp.float32, -bound, bound)


if __name__ == "__main__":
    # Small shapes consistent with the module: input_dim = output_dim = C.
    B, C, H, W = 2, 16, 16, 16
    r = 4
    scale = C // r

    key = jax.random.PRNGKey(0)
    kx, kw1, kb1, kw2, kb2 = jax.random.split(key, 5)

    x = jax.random.normal(kx, (B, C, H, W), jnp.float32)
    w1 = _xavier_uniform(kw1, C, scale)     # (C, scale)  == fc1.weight.T
    b1 = _bias_init(kb1, C, scale)          # (1, scale)
    w2 = _xavier_uniform(kw2, scale, C)     # (scale, C)  == fc2.weight.T
    b2 = _bias_init(kb2, scale, C)          # (1, C)

    out = jax.block_until_ready(task_normalization(x, w1, b1, w2, b2))

    # Pure-JAX reference.
    m_ref = jnp.mean(x.reshape(B, C, H * W), axis=2)
    h_ref = jnp.maximum(m_ref @ w1 + b1, 0.0)
    s_ref = jax.nn.sigmoid(h_ref @ w2 + b2)
    ref = x * s_ref[:, :, None, None]

    assert out.shape == (B, C, H, W)
    assert jnp.allclose(out, ref, atol=1e-5, rtol=1e-5), "mismatch vs reference"
    print("KERNEL_OK")
</pallas_src>

<mosaic_0001>
module attributes {stable_mosaic.version = 11 : i64} {
  func.func @_mean_kernel(%arg0: i32, %arg1: i32, %arg2: memref<1x16x256xf32, #tpu.memory_space<vmem>>, %arg3: memref<1x1x16xf32, #tpu.memory_space<vmem>>, %arg4: memref<1x1x16xf32, #tpu.memory_space<vmem>>) attributes {dimension_semantics = [#tpu.dimension_semantics<parallel>, #tpu.dimension_semantics<arbitrary>], iteration_bounds = array<i64: 2, 1>, scalar_prefetch = 0 : i64, scratch_operands = 1 : i64, tpu.core_type = #tpu.core_type<tc>, window_params = [{transform_indices = @transform_0, window_bounds = array<i64: 1, 16, 256>}, {transform_indices = @transform_1, window_bounds = array<i64: 1, 1, 16>}]} {
    %c0_i32 = arith.constant 0 : i32
    %0 = arith.cmpi eq, %arg1, %c0_i32 : i32
    %1 = arith.extui %0 : i1 to i32
    %c0_i32_0 = arith.constant 0 : i32
    %2 = arith.cmpi ne, %1, %c0_i32_0 : i32
    scf.if %2 {
      %cst_11 = arith.constant 0.000000e+00 : f32
      %12 = vector.broadcast %cst_11 : f32 to vector<1x1x16xf32>
      %c0_12 = arith.constant 0 : index
      %c0_13 = arith.constant 0 : index
      %c0_14 = arith.constant 0 : index
      %13 = vector.load %arg4[%c0_12, %c0_13, %c0_14] : memref<1x1x16xf32, #tpu.memory_space<vmem>>, vector<1x1x16xf32>
      tpu.vector_store %arg4[%c0_12, %c0_13, %c0_14], %12 {strides = array<i32>} : memref<1x1x16xf32, #tpu.memory_space<vmem>>, vector<1x1x16xf32>,
    } else {
    }
    %c0 = arith.constant 0 : index
    %c0_1 = arith.constant 0 : index
    %c0_2 = arith.constant 0 : index
    %3 = vector.load %arg2[%c0, %c0_1, %c0_2] : memref<1x16x256xf32, #tpu.memory_space<vmem>>, vector<1x16x256xf32>
    %c0_3 = arith.constant 0 : index
    %c0_4 = arith.constant 0 : index
    %c0_5 = arith.constant 0 : index
    %4 = vector.load %arg4[%c0_3, %c0_4, %c0_5] : memref<1x1x16xf32, #tpu.memory_space<vmem>>, vector<1x1x16xf32>
    %cst = arith.constant dense<0.000000e+00> : vector<1x16xf32>
    %5 = vector.multi_reduction <add>, %3, %cst [2] : vector<1x16x256xf32> to vector<1x16xf32>
    %6 = vector.shape_cast %5 : vector<1x16xf32> to vector<1x1x16xf32>
    %7 = arith.addf %4, %6 : vector<1x1x16xf32>
    %c0_6 = arith.constant 0 : index
    %c0_7 = arith.constant 0 : index
    %c0_8 = arith.constant 0 : index
    %8 = vector.load %arg4[%c0_6, %c0_7, %c0_8] : memref<1x1x16xf32, #tpu.memory_space<vmem>>, vector<1x1x16xf32>
    tpu.vector_store %arg4[%c0_6, %c0_7, %c0_8], %7 {strides = array<i32>} : memref<1x1x16xf32, #tpu.memory_space<vmem>>, vector<1x1x16xf32>,
    %c0_i32_9 = arith.constant 0 : i32
    %9 = arith.cmpi eq, %arg1, %c0_i32_9 : i32
    %10 = arith.extui %9 : i1 to i32
    %c0_i32_10 = arith.constant 0 : i32
    %11 = arith.cmpi ne, %10, %c0_i32_10 : i32
    scf.if %11 {
      %c0_11 = arith.constant 0 : index
      %c0_12 = arith.constant 0 : index
      %c0_13 = arith.constant 0 : index
      %12 = vector.load %arg4[%c0_11, %c0_12, %c0_13] : memref<1x1x16xf32, #tpu.memory_space<vmem>>, vector<1x1x16xf32>
      %cst_14 = arith.constant 3.906250e-03 : f32
      %13 = vector.broadcast %cst_14 : f32 to vector<1x1x16xf32>
      %14 = arith.mulf %12, %13 : vector<1x1x16xf32>
      %c0_15 = arith.constant 0 : index
      %c0_16 = arith.constant 0 : index
      %c0_17 = arith.constant 0 : index
      %15 = vector.load %arg3[%c0_15, %c0_16, %c0_17] : memref<1x1x16xf32, #tpu.memory_space<vmem>>, vector<1x1x16xf32>
      tpu.vector_store %arg3[%c0_15, %c0_16, %c0_17], %14 {strides = array<i32>} : memref<1x1x16xf32, #tpu.memory_space<vmem>>, vector<1x1x16xf32>,
    } else {
    }
    return
  }
  func.func @transform_0(%arg0: i32, %arg1: i32) -> (i32, i32, i32) {
    %c0_i32 = arith.constant 0 : i32
    %c0_i32_0 = arith.constant 0 : i32
    return %arg0, %c0_i32, %arg1 : i32, i32, i32
  }
  func.func @transform_1(%arg0: i32, %arg1: i32) -> (i32, i32, i32) {
    %c0_i32 = arith.constant 0 : i32
    %c0_i32_0 = arith.constant 0 : i32
    %c0_i32_1 = arith.constant 0 : i32
    return %arg0, %c0_i32, %c0_i32_0 : i32, i32, i32
  }
}

module attributes {stable_mosaic.version = 11 : i64} {
  func.func @_scale_kernel(%arg0: i32, %arg1: i32, %arg2: memref<1x16x1xf32, #tpu.memory_space<vmem>>, %arg3: memref<1x16x256xf32, #tpu.memory_space<vmem>>, %arg4: memref<1x16x256xf32, #tpu.memory_space<vmem>>) attributes {dimension_semantics = [#tpu.dimension_semantics<parallel>, #tpu.dimension_semantics<parallel>], iteration_bounds = array<i64: 2, 1>, scalar_prefetch = 0 : i64, scratch_operands = 0 : i64, tpu.core_type = #tpu.core_type<tc>, window_params = [{transform_indices = @transform_0, window_bounds = array<i64: 1, 16, 1>}, {transform_indices = @transform_1, window_bounds = array<i64: 1, 16, 256>}, {transform_indices = @transform_2, window_bounds = array<i64: 1, 16, 256>}]} {
    %c0 = arith.constant 0 : index
    %c0_0 = arith.constant 0 : index
    %c0_1 = arith.constant 0 : index
    %0 = vector.load %arg3[%c0, %c0_0, %c0_1] : memref<1x16x256xf32, #tpu.memory_space<vmem>>, vector<1x16x256xf32>
    %c0_2 = arith.constant 0 : index
    %c0_3 = arith.constant 0 : index
    %c0_4 = arith.constant 0 : index
    %1 = vector.load %arg2[%c0_2, %c0_3, %c0_4] : memref<1x16x1xf32, #tpu.memory_space<vmem>>, vector<1x16x1xf32>
    %2 = vector.broadcast %1 : vector<1x16x1xf32> to vector<1x16x256xf32>
    %3 = arith.mulf %0, %2 : vector<1x16x256xf32>
    %c0_5 = arith.constant 0 : index
    %c0_6 = arith.constant 0 : index
    %c0_7 = arith.constant 0 : index
    %4 = vector.load %arg4[%c0_5, %c0_6, %c0_7] : memref<1x16x256xf32, #tpu.memory_space<vmem>>, vector<1x16x256xf32>
    tpu.vector_store %arg4[%c0_5, %c0_6, %c0_7], %3 {strides = array<i32>} : memref<1x16x256xf32, #tpu.memory_space<vmem>>, vector<1x16x256xf32>,
    return
  }
  func.func @transform_0(%arg0: i32, %arg1: i32) -> (i32, i32, i32) {
    %c0_i32 = arith.constant 0 : i32
    %c0_i32_0 = arith.constant 0 : i32
    %c0_i32_1 = arith.constant 0 : i32
    return %arg0, %c0_i32, %c0_i32_0 : i32, i32, i32
  }
  func.func @transform_1(%arg0: i32, %arg1: i32) -> (i32, i32, i32) {
    %c0_i32 = arith.constant 0 : i32
    %c0_i32_0 = arith.constant 0 : i32
    return %arg0, %c0_i32, %arg1 : i32, i32, i32
  }
  func.func @transform_2(%arg0: i32, %arg1: i32) -> (i32, i32, i32) {
    %c0_i32 = arith.constant 0 : i32
    %c0_i32_0 = arith.constant 0 : i32
    return %arg0, %c0_i32, %arg1 : i32, i32, i32
  }
}

</mosaic_0001>

<llo_original>
// kernel: task_normalization.2
$region0: #{task_normalization.2}
  #allocation0 [shape = 'u32[]', space=smem, size = 0x4, offset = 0x4, fixed_abs, tag = 'smem constant byte address 0x4 - core index']
  #allocation1 [shape = 'u32[144,128]{1,0:T(1,128)}', space=vmem, size = 0x12000, scoped, tag = 'internal scratch']
  #allocation2 [shape = 'f32[1,1,16]{2,1,0:T(1,128)}', space=vmem, size = 0x200, scoped, tag = 'scratch operand']
  %s0 = inlined_call_operand.vmem [shape: f32[2,16,256], index: 0, kind: input, shape index: {}]
  %s1 = inlined_call_operand.vmem [shape: f32[2,1,16], index: 1, kind: output, shape index: {}]
  %s2 = sld [smem:[#allocation0]]
  $region45: #{task_normalization.2} parent=0
    _
  %s4 = ssub.s32 1, %s2
  %s5 = scalar_select 0, %s4, %s2
  loop: start=0, step=1, limit=4
  $region2: #{task_normalization.2} parent=0 // loop_pre_header
    _
  $region3: #{task_normalization.2} parent=0 // loop_header
    %s7 = sphi 0, %s11
    %p8 = scmp.ge.s32.totalorder %s7, 4
    %s14 = sphi 0, %s26
    %s15 = sphi 0, %s22
    %s16 = sphi 0, %s14
    %s17 = sphi 0, %s15
    %s18 = sphi 0, %s16
    %s19 = sphi 0, %s17
    %s31 = sphi 0, %s33
    %s34 = sphi 0, %s31
    %s35 = sphi 0, %s34
    %s51 = sphi 0, %s35
    %s57 = sphi 0, %s59
    %s60 = sphi 0, %s57
    %s61 = sphi 0, %s60
    %s77 = sphi 0, %s61
  $region4: #{task_normalization.2} parent=0 // loop_header_branch
    %10 = sbr.rel (%p8) target = $region8
  $region5: #{task_normalization.2} parent=0 // loop_body
    %s12 = ssub.s32 %s7, 1
    %s13 = ssub.s32 %s7, 2
    %s20 = sadd.s32 1, %s15
    %p21 = scmp.ge.s32.totalorder %s20, 1
    %s22 = scalar_select %p21, 0, %s20
    %s23 = sadd.s32 1, %s14
    %s24 = scalar_select %p21, %s23, %s14
    %p25 = scmp.ge.s32.totalorder %s24, 2
    %s26 = scalar_select %p25, 0, %s24
    %s27 = ssub.s32 %s14, %s26
    %s28 = ssub.s32 %s15, %s22
    %s29 = sor.u32 %s27, %s28
    %p30 = scmp.eq.s32.totalorder %s29, 0
    %s32 = sadd.s32 %s31, 1
    %s33 = scalar_select %p30, %s31, %s32
    %p36 = pneg %p30
    %p37 = scmp.eq.s32.totalorder %s7, 1
    %p38 = por %p36, %p37
    %p39 = scmp.ne.s32.totalorder %s31, %s34
    %p40 = scmp.eq.s32.totalorder %s7, 0
    %p41 = por %p39, %p40
    %p42 = scmp.ne.s32.totalorder %s31, %s34
    %p43 = scmp.eq.s32.totalorder %s12, 1
    %p44 = por %p42, %p43
    %p45 = scmp.ne.s32.totalorder %s34, %s35
    %p46 = scmp.eq.s32.totalorder %s12, 0
    %p47 = por %p45, %p46
    %p48 = scmp.ne.s32.totalorder %s34, %s35
    %p49 = scmp.eq.s32.totalorder %s13, 1
    %p50 = por %p48, %p49
    %p52 = scmp.ne.s32.totalorder %s35, %s51
    %p53 = scmp.eq.s32.totalorder %s13, 0
    %p54 = por %p52, %p53
    %s55 = ssub.s32 %s14, %s26
    %p56 = scmp.eq.s32.totalorder %s55, 0
    %s58 = sadd.s32 %s57, 1
    %s59 = scalar_select %p56, %s57, %s58
    %p62 = pneg %p56
    %p63 = scmp.eq.s32.totalorder %s7, 1
    %p64 = por %p62, %p63
    %p65 = scmp.ne.s32.totalorder %s57, %s60
    %p66 = scmp.eq.s32.totalorder %s7, 0
    %p67 = por %p65, %p66
    %p68 = scmp.ne.s32.totalorder %s57, %s60
    %p69 = scmp.eq.s32.totalorder %s12, 1
    %p70 = por %p68, %p69
    %p71 = scmp.ne.s32.totalorder %s60, %s61
    %p72 = scmp.eq.s32.totalorder %s12, 0
    %p73 = por %p71, %p72
    %p74 = scmp.ne.s32.totalorder %s60, %s61
    %p75 = scmp.eq.s32.totalorder %s13, 1
    %p76 = por %p74, %p75
    %p78 = scmp.ne.s32.totalorder %s61, %s77
    %p79 = scmp.eq.s32.totalorder %s13, 0
    %p80 = por %p78, %p79
    %p81 = scmp.le.s32.totalorder 1, %s7
    %p82 = scmp.lt.s32.totalorder %s7, 3
    %p83 = pnand %p81, %p82
    %p84 = pneg %p83
    // Predicated region
    $region9: #{task_normalization.2} parent=5 // pred_check
      _
    $region10: #{task_normalization.2} parent=5 // pred_check_branch
      %86 = sbr.rel (%p83) target = $region12
    $region11: #{task_normalization.2} parent=5 // pred_region
      %s87 = ssub.s32 %s7, 1
    $region12: #{task_normalization.2} parent=5 // pred_fallthru
      _
    %p88 = scmp.lt.s32.totalorder %s7, 2
    // Predicated region
    $region13: #{task_normalization.2} parent=5 // pred_check
      %p89 = pneg %p88
    $region14: #{task_normalization.2} parent=5 // pred_check_branch
      %91 = sbr.rel (%p89) target = $region16
    $region15: #{task_normalization.2} parent=5 // pred_region
      // Predicated region
      $region17: #{task_normalization.2} parent=15 // pred_check
        %p92 = pneg %p41
      $region18: #{task_normalization.2} parent=15 // pred_check_branch
        %94 = sbr.rel (%p92) target = $region20
      $region19: #{task_normalization.2} parent=15 // pred_region
        %s95 = smul.u32 2, %s15
        %p96 = scmp.lt.s32.totalorder %s14, 1
        %s97 = scalar_select %p96, %s14, 1
        %p98 = scmp.lt.s32.totalorder %s95, 1
        %s99 = scalar_select %p98, %s95, 1
        %s100 = smul.addr %s97, 4
        %s101 = sadd.s32 %s99, %s100
        %s102 = smul.addr %s101, 8
        %s103 = scalar_lea.vmem %s0, %s102
        %s104 = smul.u32 2, %s15
      $region20: #{task_normalization.2} parent=15 // pred_fallthru
        _
    $region16: #{task_normalization.2} parent=5 // pred_fallthru
      _
    %p105 = scmp.le.s32.totalorder 1, %s7
    %p106 = scmp.lt.s32.totalorder %s7, 3
    %p107 = pnand %p105, %p106
    %p108 = pneg %p107
    // Predicated region
    $region21: #{task_normalization.2} parent=5 // pred_check
      _
    $region22: #{task_normalization.2} parent=5 // pred_check_branch
      %110 = sbr.rel (%p107) target = $region24
    $region23: #{task_normalization.2} parent=5 // pred_region
      %s111 = ssub.s32 %s7, 1
      %s112 = smul.u32 2, %s17
      %p113 = scmp.lt.s32.totalorder %s16, 1
      %s114 = scalar_select %p113, %s16, 1
      %p115 = scmp.lt.s32.totalorder %s112, 1
      %s116 = scalar_select %p115, %s112, 1
      %s117 = smul.addr %s114, 4
      %s118 = sadd.s32 %s116, %s117
      %s119 = smul.addr %s118, 8
      %s120 = scalar_lea.vmem %s0, %s119
      %p121 = pneg %p47
      %p122 = pneg %p44
      %p123 = pneg %p73
      %p124 = pneg %p70
      %p125 = scmp.lt.s32.totalorder %s16, 1
      %s126 = scalar_select %p125, %s16, 1
      %s127 = scalar_lea.vmem %s1, %s126
      %s128 = smul.u32 2, %s17
      %p129 = scmp.lt.s32.totalorder %s16, 1
      %s130 = scalar_select %p129, %s16, 1
      %p131 = scmp.lt.s32.totalorder %s128, 1
      %s132 = scalar_select %p131, %s128, 1
      %s133 = smul.addr %s130, 4
      %s134 = sadd.s32 %s132, %s133
      %s135 = smul.addr %s134, 8
      %s136 = scalar_lea.vmem %s0, %s135
      %s137 = smul.u32 2, %s17
      %p138 = scmp.lt.s32.totalorder %s16, 1
      %s139 = scalar_select %p138, %s16, 1
      %s140 = scalar_lea.vmem %s1, %s139
      %p141 = scmp.eq.s32.totalorder %s17, 0
      // Predicated region
      $region25: #{task_normalization.2} parent=23 // pred_check
        %p142 = pneg %p141
      $region26: #{task_normalization.2} parent=23 // pred_check_branch
        %144 = sbr.rel (%p142) target = $region28
      $region27: #{task_normalization.2} parent=23 // pred_region
        %vm145 = vcmask 122880
        %146 = vst.msk [vmem:[#allocation2] sm:$0x1] %vm145, 0.0
      $region28: #{task_normalization.2} parent=23 // pred_fallthru
        _
      %v147 = vld [vmem:[%s136] sm:$0xff]
      %v148 = vld [vmem:[%s136 + $0x8] sm:$0xff]
      %v149 = vld [vmem:[%s136 + $0x10] sm:$0xff]
      %v150 = vld [vmem:[%s136 + $0x18] sm:$0xff]
      %v151 = vld [vmem:[#allocation2] sm:$0x1]
      %v152 = vadd.f32 %v147, %v148
      %153 = vadd.xlane.f32.xlu0 %v152
      %v154 = vpop.xlane.xlu0 %153
      %v155 = vadd.f32 %v149, %v150
      %156 = vadd.xlane.f32.xlu0 %v155
      %v157 = vpop.xlane.xlu0 %156
      %v160 = vlaneseq
      %v161 = vshrl.u32 %v160, 7
      %v162 = vsub.s32 0, %v161
      %v163 = vrot.slane %v154, %v162
      %v164 = vlaneseq
      %v165 = vshrl.u32 %v164, 7
      %v166 = vsub.s32 1, %v165
      %v167 = vrot.slane %v154, %v166
      %v168 = vlaneseq
      %v169 = vshrl.u32 %v168, 7
      %v170 = vsub.s32 2, %v169
      %v171 = vrot.slane %v154, %v170
      %v172 = vlaneseq
      %v173 = vshrl.u32 %v172, 7
      %v174 = vsub.s32 3, %v173
      %v175 = vrot.slane %v154, %v174
      %v176 = vlaneseq
      %v177 = vshrl.u32 %v176, 7
      %v178 = vsub.s32 4, %v177
      %v179 = vrot.slane %v154, %v178
      %v180 = vlaneseq
      %v181 = vshrl.u32 %v180, 7
      %v182 = vsub.s32 5, %v181
      %v183 = vrot.slane %v154, %v182
      %v184 = vlaneseq
      %v185 = vshrl.u32 %v184, 7
      %v186 = vsub.s32 6, %v185
      %v187 = vrot.slane %v154, %v186
      %v188 = vlaneseq
      %v189 = vshrl.u32 %v188, 7
      %v190 = vsub.s32 7, %v189
      %v191 = vrot.slane %v154, %v190
      %v192 = vlaneseq
      %v193 = vshrl.u32 %v192, 7
      %v194 = vsub.s32 0, %v193
      %v195 = vrot.slane %v157, %v194
      %v196 = vlaneseq
      %v197 = vshrl.u32 %v196, 7
      %v198 = vsub.s32 1, %v197
      %v199 = vrot.slane %v157, %v198
      %v200 = vlaneseq
      %v201 = vshrl.u32 %v200, 7
      %v202 = vsub.s32 2, %v201
      %v203 = vrot.slane %v157, %v202
      %v204 = vlaneseq
      %v205 = vshrl.u32 %v204, 7
      %v206 = vsub.s32 3, %v205
      %v207 = vrot.slane %v157, %v206
      %v208 = vlaneseq
      %v209 = vshrl.u32 %v208, 7
      %v210 = vsub.s32 4, %v209
      %v211 = vrot.slane %v157, %v210
      %v212 = vlaneseq
      %v213 = vshrl.u32 %v212, 7
      %v214 = vsub.s32 5, %v213
      %v215 = vrot.slane %v157, %v214
      %v216 = vlaneseq
      %v217 = vshrl.u32 %v216, 7
      %v218 = vsub.s32 6, %v217
      %v219 = vrot.slane %v157, %v218
      %v220 = vlaneseq
      %v221 = vshrl.u32 %v220, 7
      %v222 = vsub.s32 7, %v221
      %v223 = vrot.slane %v157, %v222
      %v224 = vcombine.low %v163, %v167
      %v225 = vcombine.low %v171, %v175
      %v226 = vcombine.low %v179, %v183
      %v227 = vcombine.low %v187, %v191
      %v229 = vunpack.c.l.s4 1966171168
      %v230 = vunpack.c.0.s8 %v229
      %v231 = vlaneseq
      %v232 = vshrl.u32 %v231, 7
      %v233 = vsub.s32 %v230, %v232
      %v234 = vrot.slane %v224, %v233
      %v236 = vunpack.c.l.s4 1966171168
      %v237 = vunpack.c.0.s8 %v236
      %v238 = vlaneseq
      %v239 = vshrl.u32 %v238, 7
      %v240 = vsub.s32 %v237, %v239
      %v241 = vrot.slane %v225, %v240
      %v243 = vunpack.c.l.s4 1966171168
      %v244 = vunpack.c.0.s8 %v243
      %v245 = vlaneseq
      %v246 = vshrl.u32 %v245, 7
      %v247 = vsub.s32 %v244, %v246
      %v248 = vrot.slane %v226, %v247
      %v250 = vunpack.c.l.s4 1966171168
      %v251 = vunpack.c.0.s8 %v250
      %v252 = vlaneseq
      %v253 = vshrl.u32 %v252, 7
      %v254 = vsub.s32 %v251, %v253
      %v255 = vrot.slane %v227, %v254
      %v256 = vcombine.low %v234, %v241
      %v257 = vcombine.low %v248, %v255
      %v259 = vunpack.c.l.s4 1966171168
      %v260 = vunpack.c.0.s8 %v259
      %v261 = vlaneseq
      %v262 = vshrl.u32 %v261, 7
      %v263 = vsub.s32 %v260, %v262
      %v264 = vrot.slane %v256, %v263
      %v266 = vunpack.c.l.s4 1966171168
      %v267 = vunpack.c.0.s8 %v266
      %v268 = vlaneseq
      %v269 = vshrl.u32 %v268, 7
      %v270 = vsub.s32 %v267, %v269
      %v271 = vrot.slane %v257, %v270
      %v272 = vcombine.low %v264, %v271
      %v273 = vcombine.low %v195, %v199
      %v274 = vcombine.low %v203, %v207
      %v275 = vcombine.low %v211, %v215
      %v276 = vcombine.low %v219, %v223
      %v278 = vunpack.c.l.s4 1966171168
      %v279 = vunpack.c.0.s8 %v278
      %v280 = vlaneseq
      %v281 = vshrl.u32 %v280, 7
      %v282 = vsub.s32 %v279, %v281
      %v283 = vrot.slane %v273, %v282
      %v285 = vunpack.c.l.s4 1966171168
      %v286 = vunpack.c.0.s8 %v285
      %v287 = vlaneseq
      %v288 = vshrl.u32 %v287, 7
      %v289 = vsub.s32 %v286, %v288
      %v290 = vrot.slane %v274, %v289
      %v292 = vunpack.c.l.s4 1966171168
      %v293 = vunpack.c.0.s8 %v292
      %v294 = vlaneseq
      %v295 = vshrl.u32 %v294, 7
      %v296 = vsub.s32 %v293, %v295
      %v297 = vrot.slane %v275, %v296
      %v299 = vunpack.c.l.s4 1966171168
      %v300 = vunpack.c.0.s8 %v299
      %v301 = vlaneseq
      %v302 = vshrl.u32 %v301, 7
      %v303 = vsub.s32 %v300, %v302
      %v304 = vrot.slane %v276, %v303
      %v305 = vcombine.low %v283, %v290
      %v306 = vcombine.low %v297, %v304
      %v308 = vunpack.c.l.s4 1966171168
      %v309 = vunpack.c.0.s8 %v308
      %v310 = vlaneseq
      %v311 = vshrl.u32 %v310, 7
      %v312 = vsub.s32 %v309, %v311
      %v313 = vrot.slane %v305, %v312
      %v315 = vunpack.c.l.s4 1966171168
      %v316 = vunpack.c.0.s8 %v315
      %v317 = vlaneseq
      %v318 = vshrl.u32 %v317, 7
      %v319 = vsub.s32 %v316, %v318
      %v320 = vrot.slane %v306, %v319
      %v321 = vcombine.low %v313, %v320
      %322 = vset.pattern.permute.xlu0 0
      %323 = vperm.xlu0 %322, %v272
      %v324 = vpop.permute.xlu0 %323
      %325 = vset.pattern.permute.xlu0 0
      %326 = vperm.xlu0 %325, %v321
      %v327 = vpop.permute.xlu0 %326
      %v328 = vlaneseq
      %v329 = vand.u32 %v328, 127
      %v330 = vlaneseq
      %v331 = vshrl.u32 %v330, 7
      %v332 = vsub.s32 %v329, %v331
      %v333 = vrot.slane %v324, %v332
      %v334 = vadd.s32 %v329, 4294967288
      %v335 = vlaneseq
      %v336 = vshrl.u32 %v335, 7
      %v337 = vsub.s32 %v334, %v336
      %v338 = vrot.slane %v327, %v337
      %vm339 = vcmask 130112
      %v340 = vsel %vm339, %v338, %v333
      %v342 = vunpack.c.l.s4 1966171168
      %v343 = vunpack.c.0.s8 %v342
      %v344 = vlaneseq
      %v345 = vshrl.u32 %v344, 7
      %v346 = vsub.s32 %v343, %v345
      %v347 = vrot.slane %v340, %v346
      %v349 = vunpack.c.l.s4 1966171168
      %v350 = vunpack.c.0.s8 %v349
      %v351 = vlaneseq
      %v352 = vshrl.u32 %v351, 7
      %v353 = vsub.s32 %v350, %v352
      %v354 = vrot.slane %v347, %v353
      %v356 = vadd.f32 %v151, %v354
      %vm357 = vcmask 122880
      %358 = vst.msk [vmem:[#allocation2] sm:$0x1] %vm357, %v356
      // Predicated region
      $region29: #{task_normalization.2} parent=23 // pred_check
        %p359 = pneg %p141
      $region30: #{task_normalization.2} parent=23 // pred_check_branch
        %361 = sbr.rel (%p359) target = $region32
      $region31: #{task_normalization.2} parent=23 // pred_region
        %v362 = vld [vmem:[#allocation2] sm:$0x1]
        %v363 = vmul.f32 %v362, 0.00390625
        %364 = vst.msk [vmem:[%s140] sm:$0x1] %vm357, %v363
      $region32: #{task_normalization.2} parent=23 // pred_fallthru
        _
      %p365 = scmp.lt.s32.totalorder %s16, 1
      %s366 = scalar_select %p365, %s16, 1
      %s367 = scalar_lea.vmem %s1, %s366
      // Predicated region
      $region33: #{task_normalization.2} parent=23 // pred_check
        %p368 = pneg %p70
      $region34: #{task_normalization.2} parent=23 // pred_check_branch
        %370 = sbr.rel (%p368) target = $region36
      $region35: #{task_normalization.2} parent=23 // pred_region
        _
      $region36: #{task_normalization.2} parent=23 // pred_fallthru
        _
    $region24: #{task_normalization.2} parent=5 // pred_fallthru
      _
    %p371 = scmp.le.s32.totalorder 2, %s7
    // Predicated region
    $region37: #{task_normalization.2} parent=5 // pred_check
      %p372 = pneg %p371
    $region38: #{task_normalization.2} parent=5 // pred_check_branch
      %374 = sbr.rel (%p372) target = $region40
    $region39: #{task_normalization.2} parent=5 // pred_region
      %s375 = ssub.s32 %s7, 2
      // Predicated region
      $region41: #{task_normalization.2} parent=39 // pred_check
        %p376 = pneg %p76
      $region42: #{task_normalization.2} parent=39 // pred_check_branch
        %378 = sbr.rel (%p376) target = $region44
      $region43: #{task_normalization.2} parent=39 // pred_region
        %p379 = scmp.lt.s32.totalorder %s18, 1
        %s380 = scalar_select %p379, %s18, 1
        %s381 = scalar_lea.vmem %s1, %s380
      $region44: #{task_normalization.2} parent=39 // pred_fallthru
        _
    $region40: #{task_normalization.2} parent=5 // pred_fallthru
      _
  $region6: #{task_normalization.2} parent=0 // loop_footer
    %s11 = sadd.s32 1, %s7
  $region7: #{task_normalization.2} parent=0 // loop_footer_branch
    %6 = sbr.rel target = $region3
  $region8: #{task_normalization.2} parent=0 // loop_exit
    _

// kernel: task_normalization.3
$region0: #{task_normalization.3}
  #allocation0 [shape = 'u32[]', space=smem, size = 0x4, offset = 0x4, fixed_abs, tag = 'smem constant byte address 0x4 - core index']
  #allocation1 [shape = 'u32[144,128]{1,0:T(1,128)}', space=vmem, size = 0x12000, scoped, tag = 'internal scratch']
  %s0 = inlined_call_operand.vmem [shape: f32[2,16,1], index: 0, kind: input, shape index: {}]
  %s1 = inlined_call_operand.vmem [shape: f32[2,16,256], index: 1, kind: input, shape index: {}, may-alias: {1,2}]
  %s2 = inlined_call_operand.vmem [shape: f32[2,16,256], index: 2, kind: output, shape index: {}, may-alias: {1,2}]
  %s3 = sld [smem:[#allocation0]]
  $region41: #{task_normalization.3} parent=0
    _
  %s5 = ssub.s32 1, %s3
  %s6 = scalar_select 0, %s5, %s3
  loop: start=0, step=1, limit=4
  $region2: #{task_normalization.3} parent=0 // loop_pre_header
    _
  $region3: #{task_normalization.3} parent=0 // loop_header
    %s8 = sphi 0, %s12
    %p9 = scmp.ge.s32.totalorder %s8, 4
    %s15 = sphi 0, %s27
    %s16 = sphi 0, %s23
    %s17 = sphi 0, %s15
    %s18 = sphi 0, %s16
    %s19 = sphi 0, %s17
    %s20 = sphi 0, %s18
    %s30 = sphi 0, %s32
    %s33 = sphi 0, %s30
    %s34 = sphi 0, %s33
    %s50 = sphi 0, %s34
    %s58 = sphi 0, %s60
    %s61 = sphi 0, %s58
    %s62 = sphi 0, %s61
    %s78 = sphi 0, %s62
    %s86 = sphi 0, %s88
    %s89 = sphi 0, %s86
    %s90 = sphi 0, %s89
    %s106 = sphi 0, %s90
  $region4: #{task_normalization.3} parent=0 // loop_header_branch
    %11 = sbr.rel (%p9) target = $region8
  $region5: #{task_normalization.3} parent=0 // loop_body
    %s13 = ssub.s32 %s8, 1
    %s14 = ssub.s32 %s8, 2
    %s21 = sadd.s32 1, %s16
    %p22 = scmp.ge.s32.totalorder %s21, 1
    %s23 = scalar_select %p22, 0, %s21
    %s24 = sadd.s32 1, %s15
    %s25 = scalar_select %p22, %s24, %s15
    %p26 = scmp.ge.s32.totalorder %s25, 2
    %s27 = scalar_select %p26, 0, %s25
    %s28 = ssub.s32 %s15, %s27
    %p29 = scmp.eq.s32.totalorder %s28, 0
    %s31 = sadd.s32 %s30, 1
    %s32 = scalar_select %p29, %s30, %s31
    %p35 = pneg %p29
    %p36 = scmp.eq.s32.totalorder %s8, 1
    %p37 = por %p35, %p36
    %p38 = scmp.ne.s32.totalorder %s30, %s33
    %p39 = scmp.eq.s32.totalorder %s8, 0
    %p40 = por %p38, %p39
    %p41 = scmp.ne.s32.totalorder %s30, %s33
    %p42 = scmp.eq.s32.totalorder %s13, 1
    %p43 = por %p41, %p42
    %p44 = scmp.ne.s32.totalorder %s33, %s34
    %p45 = scmp.eq.s32.totalorder %s13, 0
    %p46 = por %p44, %p45
    %p47 = scmp.ne.s32.totalorder %s33, %s34
    %p48 = scmp.eq.s32.totalorder %s14, 1
    %p49 = por %p47, %p48
    %p51 = scmp.ne.s32.totalorder %s34, %s50
    %p52 = scmp.eq.s32.totalorder %s14, 0
    %p53 = por %p51, %p52
    %s54 = ssub.s32 %s15, %s27
    %s55 = ssub.s32 %s16, %s23
    %s56 = sor.u32 %s54, %s55
    %p57 = scmp.eq.s32.totalorder %s56, 0
    %s59 = sadd.s32 %s58, 1
    %s60 = scalar_select %p57, %s58, %s59
    %p63 = pneg %p57
    %p64 = scmp.eq.s32.totalorder %s8, 1
    %p65 = por %p63, %p64
    %p66 = scmp.ne.s32.totalorder %s58, %s61
    %p67 = scmp.eq.s32.totalorder %s8, 0
    %p68 = por %p66, %p67
    %p69 = scmp.ne.s32.totalorder %s58, %s61
    %p70 = scmp.eq.s32.totalorder %s13, 1
    %p71 = por %p69, %p70
    %p72 = scmp.ne.s32.totalorder %s61, %s62
    %p73 = scmp.eq.s32.totalorder %s13, 0
    %p74 = por %p72, %p73
    %p75 = scmp.ne.s32.totalorder %s61, %s62
    %p76 = scmp.eq.s32.totalorder %s14, 1
    %p77 = por %p75, %p76
    %p79 = scmp.ne.s32.totalorder %s62, %s78
    %p80 = scmp.eq.s32.totalorder %s14, 0
    %p81 = por %p79, %p80
    %s82 = ssub.s32 %s15, %s27
    %s83 = ssub.s32 %s16, %s23
    %s84 = sor.u32 %s82, %s83
    %p85 = scmp.eq.s32.totalorder %s84, 0
    %s87 = sadd.s32 %s86, 1
    %s88 = scalar_select %p85, %s86, %s87
    %p91 = pneg %p85
    %p92 = scmp.eq.s32.totalorder %s8, 1
    %p93 = por %p91, %p92
    %p94 = scmp.ne.s32.totalorder %s86, %s89
    %p95 = scmp.eq.s32.totalorder %s8, 0
    %p96 = por %p94, %p95
    %p97 = scmp.ne.s32.totalorder %s86, %s89
    %p98 = scmp.eq.s32.totalorder %s13, 1
    %p99 = por %p97, %p98
    %p100 = scmp.ne.s32.totalorder %s89, %s90
    %p101 = scmp.eq.s32.totalorder %s13, 0
    %p102 = por %p100, %p101
    %p103 = scmp.ne.s32.totalorder %s89, %s90
    %p104 = scmp.eq.s32.totalorder %s14, 1
    %p105 = por %p103, %p104
    %p107 = scmp.ne.s32.totalorder %s90, %s106
    %p108 = scmp.eq.s32.totalorder %s14, 0
    %p109 = por %p107, %p108
    %p110 = scmp.le.s32.totalorder 1, %s8
    %p111 = scmp.lt.s32.totalorder %s8, 3
    %p112 = pnand %p110, %p111
    %p113 = pneg %p112
    // Predicated region
    $region9: #{task_normalization.3} parent=5 // pred_check
      _
    $region10: #{task_normalization.3} parent=5 // pred_check_branch
      %115 = sbr.rel (%p112) target = $region12
    $region11: #{task_normalization.3} parent=5 // pred_region
      %s116 = ssub.s32 %s8, 1
    $region12: #{task_normalization.3} parent=5 // pred_fallthru
      _
    %p117 = scmp.lt.s32.totalorder %s8, 2
    // Predicated region
    $region13: #{task_normalization.3} parent=5 // pred_check
      %p118 = pneg %p117
    $region14: #{task_normalization.3} parent=5 // pred_check_branch
      %120 = sbr.rel (%p118) target = $region16
    $region15: #{task_normalization.3} parent=5 // pred_region
      // Predicated region
      $region17: #{task_normalization.3} parent=15 // pred_check
        %p121 = pneg %p40
      $region18: #{task_normalization.3} parent=15 // pred_check_branch
        %123 = sbr.rel (%p121) target = $region20
      $region19: #{task_normalization.3} parent=15 // pred_region
        %p124 = scmp.lt.s32.totalorder %s15, 1
        %s125 = scalar_select %p124, %s15, 1
        %s126 = smul.addr %s125, 2
        %s127 = smul.addr %s126, 8
        %s128 = scalar_lea.vmem %s0, %s127
      $region20: #{task_normalization.3} parent=15 // pred_fallthru
        _
      // Predicated region
      $region21: #{task_normalization.3} parent=15 // pred_check
        %p129 = pneg %p68
      $region22: #{task_normalization.3} parent=15 // pred_check_branch
        %131 = sbr.rel (%p129) target = $region24
      $region23: #{task_normalization.3} parent=15 // pred_region
        %s132 = smul.u32 2, %s16
        %p133 = scmp.lt.s32.totalorder %s15, 1
        %s134 = scalar_select %p133, %s15, 1
        %p135 = scmp.lt.s32.totalorder %s132, 1
        %s136 = scalar_select %p135, %s132, 1
        %s137 = smul.addr %s134, 4
        %s138 = sadd.s32 %s136, %s137
        %s139 = smul.addr %s138, 8
        %s140 = scalar_lea.vmem %s1, %s139
        %s141 = smul.u32 2, %s16
      $region24: #{task_normalization.3} parent=15 // pred_fallthru
        _
    $region16: #{task_normalization.3} parent=5 // pred_fallthru
      _
    %p142 = scmp.le.s32.totalorder 1, %s8
    %p143 = scmp.lt.s32.totalorder %s8, 3
    %p144 = pnand %p142, %p143
    %p145 = pneg %p144
    // Predicated region
    $region25: #{task_normalization.3} parent=5 // pred_check
      _
    $region26: #{task_normalization.3} parent=5 // pred_check_branch
      %147 = sbr.rel (%p144) target = $region28
    $region27: #{task_normalization.3} parent=5 // pred_region
      %s148 = ssub.s32 %s8, 1
      %p149 = scmp.lt.s32.totalorder %s17, 1
      %s150 = scalar_select %p149, %s17, 1
      %s151 = smul.addr %s150, 2
      %s152 = smul.addr %s151, 8
      %s153 = scalar_lea.vmem %s0, %s152
      %p154 = pneg %p46
      %p155 = pneg %p43
      %s156 = smul.u32 2, %s18
      %p157 = scmp.lt.s32.totalorder %s17, 1
      %s158 = scalar_select %p157, %s17, 1
      %p159 = scmp.lt.s32.totalorder %s156, 1
      %s160 = scalar_select %p159, %s156, 1
      %s161 = smul.addr %s158, 4
      %s162 = sadd.s32 %s160, %s161
      %s163 = smul.addr %s162, 8
      %s164 = scalar_lea.vmem %s1, %s163
      %p165 = pneg %p74
      %p166 = pneg %p71
      %p167 = pneg %p102
      %p168 = pneg %p99
      %s169 = smul.u32 2, %s18
      %p170 = scmp.lt.s32.totalorder %s17, 1
      %s171 = scalar_select %p170, %s17, 1
      %p172 = scmp.lt.s32.totalorder %s169, 1
      %s173 = scalar_select %p172, %s169, 1
      %s174 = smul.addr %s171, 4
      %s175 = sadd.s32 %s173, %s174
      %s176 = smul.addr %s175, 8
      %s177 = scalar_lea.vmem %s2, %s176
      %p178 = scmp.lt.s32.totalorder %s17, 1
      %s179 = scalar_select %p178, %s17, 1
      %s180 = smul.addr %s179, 2
      %s181 = smul.addr %s180, 8
      %s182 = scalar_lea.vmem %s0, %s181
      %s183 = smul.u32 2, %s18
      %p184 = scmp.lt.s32.totalorder %s17, 1
      %s185 = scalar_select %p184, %s17, 1
      %p186 = scmp.lt.s32.totalorder %s183, 1
      %s187 = scalar_select %p186, %s183, 1
      %s188 = smul.addr %s185, 4
      %s189 = sadd.s32 %s187, %s188
      %s190 = smul.addr %s189, 8
      %s191 = scalar_lea.vmem %s1, %s190
      %s192 = smul.u32 2, %s18
      %s193 = smul.u32 2, %s18
      %p194 = scmp.lt.s32.totalorder %s17, 1
      %s195 = scalar_select %p194, %s17, 1
      %p196 = scmp.lt.s32.totalorder %s193, 1
      %s197 = scalar_select %p196, %s193, 1
      %s198 = smul.addr %s195, 4
      %s199 = sadd.s32 %s197, %s198
      %s200 = smul.addr %s199, 8
      %s201 = scalar_lea.vmem %s2, %s200
      %s202 = smul.u32 2, %s18
      %v203 = vld [vmem:[%s191] sm:$0xff]
      %v204 = vld [vmem:[%s191 + $0x8] sm:$0xff]
      %v205 = vld [vmem:[%s191 + $0x10] sm:$0xff]
      %v206 = vld [vmem:[%s191 + $0x18] sm:$0xff]
      %v207 = vld [vmem:[%s182] sm:$0xff]
      %v208 = vld [vmem:[%s182 + $0x8] sm:$0xff]
      %210 = vset.pattern.permute.xlu0 0
      %211 = vperm.xlu0 %210, %v207
      %v212 = vpop.permute.xlu0 %211
      %215 = vset.pattern.permute.xlu0 0
      %216 = vperm.xlu0 %215, %v208
      %v217 = vpop.permute.xlu0 %216
      %v219 = vmul.f32 %v203, %v212
      %v220 = vmul.f32 %v204, %v212
      %v221 = vmul.f32 %v205, %v217
      %v222 = vmul.f32 %v206, %v217
      %223 = vst [vmem:[%s201] sm:$0xff] %v219
      %224 = vst [vmem:[%s201 + $0x8] sm:$0xff] %v220
      %225 = vst [vmem:[%s201 + $0x10] sm:$0xff] %v221
      %226 = vst [vmem:[%s201 + $0x18] sm:$0xff] %v222
      %s227 = smul.u32 2, %s18
      %p228 = scmp.lt.s32.totalorder %s17, 1
      %s229 = scalar_select %p228, %s17, 1
      %p230 = scmp.lt.s32.totalorder %s227, 1
      %s231 = scalar_select %p230, %s227, 1
      %s232 = smul.addr %s229, 4
      %s233 = sadd.s32 %s231, %s232
      %s234 = smul.addr %s233, 8
      %s235 = scalar_lea.vmem %s2, %s234
      // Predicated region
      $region29: #{task_normalization.3} parent=27 // pred_check
        %p236 = pneg %p99
      $region30: #{task_normalization.3} parent=27 // pred_check_branch
        %238 = sbr.rel (%p236) target = $region32
      $region31: #{task_normalization.3} parent=27 // pred_region
        %s239 = smul.u32 2, %s18
      $region32: #{task_normalization.3} parent=27 // pred_fallthru
        _
    $region28: #{task_normalization.3} parent=5 // pred_fallthru
      _
    %p240 = scmp.le.s32.totalorder 2, %s8
    // Predicated region
    $region33: #{task_normalization.3} parent=5 // pred_check
      %p241 = pneg %p240
    $region34: #{task_normalization.3} parent=5 // pred_check_branch
      %243 = sbr.rel (%p241) target = $region36
    $region35: #{task_normalization.3} parent=5 // pred_region
      %s244 = ssub.s32 %s8, 2
      // Predicated region
      $region37: #{task_normalization.3} parent=35 // pred_check
        %p245 = pneg %p105
      $region38: #{task_normalization.3} parent=35 // pred_check_branch
        %247 = sbr.rel (%p245) target = $region40
      $region39: #{task_normalization.3} parent=35 // pred_region
        %s248 = smul.u32 2, %s20
        %p249 = scmp.lt.s32.totalorder %s19, 1
        %s250 = scalar_select %p249, %s19, 1
        %p251 = scmp.lt.s32.totalorder %s248, 1
        %s252 = scalar_select %p251, %s248, 1
        %s253 = smul.addr %s250, 4
        %s254 = sadd.s32 %s252, %s253
        %s255 = smul.addr %s254, 8
        %s256 = scalar_lea.vmem %s2, %s255
      $region40: #{task_normalization.3} parent=35 // pred_fallthru
        _
    $region36: #{task_normalization.3} parent=5 // pred_fallthru
      _
  $region6: #{task_normalization.3} parent=0 // loop_footer
    %s12 = sadd.s32 1, %s8
  $region7: #{task_normalization.3} parent=0 // loop_footer_branch
    %7 = sbr.rel target = $region3
  $region8: #{task_normalization.3} parent=0 // loop_exit
    _

</llo_original>
